<compile_context>
chip_gen: v7x
topology: tpu7x:2x2x1
jax: 0.10.0
libtpu: 0.0.40
codegen_flags: <defaults>
</compile_context>

<pallas_src>
import jax
import jax.numpy as jnp
from jax.experimental import pallas as pl
from jax.experimental.pallas import tpu as pltpu


LANE = 128
SUBLANE = 8
MAX_TILE_ROWS = 2048  # 2048 x 128 x 4B = 1 MiB f32 tile; safe on all generations.


def _round_up(v: int, m: int) -> int:
    return ((v + m - 1) // m) * m


def drop_path_kernel(x_ref, s_ref, o_ref):
    # x_ref / o_ref: (TILE_ROWS, 128) tile of the flattened activations.
    # s_ref:         (TILE_ROWS, 1) f32 per-row scale (0.0 or 1/keep_prob),
    #                constant within a sample by construction.
    # Multiply in f32 (x promotes against the f32 scale), cast on the store.
    o_ref[...] = (x_ref[...] * s_ref[...]).astype(o_ref.dtype)


def drop_path_pallas(x, drop_prob: float, seed: int, training: bool = True):
    """Pallas implementation of drop_path(x, drop_prob, training)."""
    if drop_prob == 0.0 or not training:
        return x

    keep_prob = 1.0 - drop_prob
    B = x.shape[0]
    N = 1
    for d in x.shape[1:]:
        N *= d

    # Per-sample bernoulli(keep_prob)/keep_prob, computed once outside the
    # tiled kernel so every tile of a sample uses the same decision.
    # TODO(synk): callers should mix a layer/step index into `seed` during
    # training so different layers/steps get independent drop patterns.
    key = jax.random.PRNGKey(seed)
    keep = jax.random.bernoulli(key, p=keep_prob, shape=(B,)).astype(jnp.float32)
    if keep_prob > 0.0:
        scale = keep / jnp.float32(keep_prob)
    else:  # matches the PyTorch guard (keep_prob == 0 -> no division)
        scale = keep

    # Lane/sublane-dense layout: pad each sample to a multiple of 8*128, view
    # the whole batch as (B*R, 128) rows of full vregs.
    N_pad = _round_up(max(N, 1), SUBLANE * LANE)
    flat = x.reshape(B, N)
    if N_pad != N:
        flat = jnp.pad(flat, ((0, 0), (0, N_pad - N)))
    R = N_pad // LANE          # rows per sample, multiple of 8
    RT = B * R                 # total rows, multiple of 8
    x2 = flat.reshape(RT, LANE)

    # One f32 scale per row (1/128 of the f32 activation bytes — negligible).
    scale_rows = jnp.repeat(scale, R).reshape(RT, 1)

    tile_rows = min(RT, MAX_TILE_ROWS)   # multiple of 8 (or == RT)
    grid = (pl.cdiv(RT, tile_rows),)     # ragged last tile is masked by Pallas

    out2 = pl.pallas_call(
        drop_path_kernel,
        out_shape=jax.ShapeDtypeStruct((RT, LANE), x.dtype),
        grid=grid,
        in_specs=[
            pl.BlockSpec((tile_rows, LANE), lambda i: (i, 0)),  # activations
            pl.BlockSpec((tile_rows, 1), lambda i: (i, 0)),     # per-row scale
        ],
        out_specs=pl.BlockSpec((tile_rows, LANE), lambda i: (i, 0)),
        compiler_params=pltpu.CompilerParams(
            dimension_semantics=("parallel",)),
    )(x2, scale_rows)

    out = out2.reshape(B, N_pad)
    if N_pad != N:
        out = out[:, :N]
    return out.reshape(x.shape)


class DropPath:
    """Drop paths (Stochastic Depth) per sample — JAX/Pallas version."""

    def __init__(self, drop_prob: float = 0.0):
        self.drop_prob = drop_prob
        self.training = True

    def __call__(self, x, seed: int = 0):
        return drop_path_pallas(x, self.drop_prob, seed, self.training)


def _check_semantics(x, y, keep_prob):
    # Each sample must be either dropped (all zeros) or scaled by 1/keep_prob.
    for b in range(x.shape[0]):
        dropped = bool(jnp.all(y[b] == 0.0))
        kept = bool(jnp.allclose(y[b], x[b] / keep_prob, rtol=1e-6, atol=1e-6))
        assert dropped or kept, "per-sample DropPath semantics violated"


if __name__ == "__main__":
    key = jax.random.PRNGKey(0)
    # NCHW input, small shapes: batch=2, channels=4, spatial=16x16
    x = jax.random.normal(key, (2, 4, 16, 16), dtype=jnp.float32)

    module = DropPath(drop_prob=0.2)
    module.training = True

    y = jax.block_until_ready(module(x, seed=0))
    assert y.shape == x.shape and y.dtype == x.dtype
    _check_semantics(x, y, 1.0 - module.drop_prob)

    # Exercise the padding path (per-sample size not a multiple of 8*128).
    x_odd = jax.random.normal(jax.random.PRNGKey(1), (2, 3, 7, 5), jnp.float32)
    y_odd = jax.block_until_ready(module(x_odd, seed=3))
    assert y_odd.shape == x_odd.shape and y_odd.dtype == x_odd.dtype
    _check_semantics(x_odd, y_odd, 1.0 - module.drop_prob)

    # Eval / drop_prob=0 path is identity (no kernel needed, matches PyTorch).
    module.training = False
    y_eval = jax.block_until_ready(module(x, seed=0))
    assert bool(jnp.array_equal(y_eval, x))

    print("KERNEL_OK")
</pallas_src>

<mosaic_0001>
module attributes {stable_mosaic.version = 11 : i64} {
  func.func @drop_path_kernel(%arg0: i32, %arg1: memref<16x128xf32, #tpu.memory_space<vmem>>, %arg2: memref<16x1xf32, #tpu.memory_space<vmem>>, %arg3: memref<16x128xf32, #tpu.memory_space<vmem>>) attributes {dimension_semantics = [#tpu.dimension_semantics<parallel>], iteration_bounds = array<i64: 1>, scalar_prefetch = 0 : i64, scratch_operands = 0 : i64, tpu.core_type = #tpu.core_type<tc>, window_params = [{transform_indices = @transform_0, window_bounds = array<i64: 16, 128>}, {transform_indices = @transform_1, window_bounds = array<i64: 16, 1>}, {transform_indices = @transform_2, window_bounds = array<i64: 16, 128>}]} {
    %c0 = arith.constant 0 : index
    %c0_0 = arith.constant 0 : index
    %0 = vector.load %arg1[%c0, %c0_0] : memref<16x128xf32, #tpu.memory_space<vmem>>, vector<16x128xf32>
    %c0_1 = arith.constant 0 : index
    %c0_2 = arith.constant 0 : index
    %1 = vector.load %arg2[%c0_1, %c0_2] : memref<16x1xf32, #tpu.memory_space<vmem>>, vector<16x1xf32>
    %2 = vector.broadcast %1 : vector<16x1xf32> to vector<16x128xf32>
    %3 = arith.mulf %0, %2 : vector<16x128xf32>
    %c0_3 = arith.constant 0 : index
    %c0_4 = arith.constant 0 : index
    %4 = vector.load %arg3[%c0_3, %c0_4] : memref<16x128xf32, #tpu.memory_space<vmem>>, vector<16x128xf32>
    tpu.vector_store %arg3[%c0_3, %c0_4], %3 {strides = array<i32>} : memref<16x128xf32, #tpu.memory_space<vmem>>, vector<16x128xf32>,
    return
  }
  func.func @transform_0(%arg0: i32) -> (i32, i32) {
    %c0_i32 = arith.constant 0 : i32
    %c0_i32_0 = arith.constant 0 : i32
    return %arg0, %c0_i32 : i32, i32
  }
  func.func @transform_1(%arg0: i32) -> (i32, i32) {
    %c0_i32 = arith.constant 0 : i32
    %c0_i32_0 = arith.constant 0 : i32
    return %arg0, %c0_i32 : i32, i32
  }
  func.func @transform_2(%arg0: i32) -> (i32, i32) {
    %c0_i32 = arith.constant 0 : i32
    %c0_i32_0 = arith.constant 0 : i32
    return %arg0, %c0_i32 : i32, i32
  }
}

</mosaic_0001>

<llo_original>
// kernel: tpu_custom_call.1
$region0: #{tpu_custom_call.1}
  #allocation0 [shape = 'u32[]', space=smem, size = 0x4, offset = 0x4, fixed_abs, tag = 'smem constant byte address 0x4 - core index']
  #allocation1 [shape = 'u32[144,128]{1,0:T(1,128)}', space=vmem, size = 0x12000, scoped, tag = 'internal scratch']
  %s0 = inlined_call_operand.vmem [shape: f32[16,128], index: 0, kind: input, shape index: {}]
  %s1 = inlined_call_operand.vmem [shape: f32[16,1], index: 1, kind: input, shape index: {}]
  %s2 = inlined_call_operand.hbm [shape: f32[16,128], index: 2, kind: output, shape index: {}]
  %s3 = sld [smem:[#allocation0]]
  $region18: #{tpu_custom_call.1} parent=0
    _
  %s5 = ssub.s32 1, %s3
  %s6 = scalar_select 0, %s5, %s3
  $region1: #{tpu_custom_call.1} parent=0
    #allocation2 [shape = 'u8[8192]{0}', space=vmem, size = 0x2000, scoped, tag = 'output window, operand 0, single buffered']
    #allocation3 [shape = 's32[1]{0}', space=sflag, size = 0x4, scoped, tag = 'scoped memory for tpu_custom_call.1']
    %7 = vsyncpa [#allocation3], 0
    // Predicated region
    $region2: #{tpu_custom_call.1} parent=1 // pred_check
      _
    $region3: #{tpu_custom_call.1} parent=1 // pred_check_branch
      %9 = sbr.rel (0) target = $region5
    $region4: #{tpu_custom_call.1} parent=1 // pred_region
      _
    $region5: #{tpu_custom_call.1} parent=1 // pred_fallthru
      _
    // Predicated region
    $region6: #{tpu_custom_call.1} parent=1 // pred_check
      _
    $region7: #{tpu_custom_call.1} parent=1 // pred_check_branch
      %11 = sbr.rel (0) target = $region9
    $region8: #{tpu_custom_call.1} parent=1 // pred_region
      _
    $region9: #{tpu_custom_call.1} parent=1 // pred_fallthru
      _
    %v12 = vld [vmem:[%s0] sm:$0xff]
    %v13 = vld [vmem:[%s0 + $0x8] sm:$0xff]
    %v14 = vld [vmem:[%s1] sm:$0xff]
    %v15 = vld [vmem:[%s1 + $0x8] sm:$0xff]
    %17 = vset.pattern.permute.xlu0 0
    %18 = vperm.xlu0 %17, %v14
    %v19 = vpop.permute.xlu0 %18
    %22 = vset.pattern.permute.xlu0 0
    %23 = vperm.xlu0 %22, %v15
    %v24 = vpop.permute.xlu0 %23
    %v26 = vmul.f32 %v12, %v19
    %v27 = vmul.f32 %v13, %v24
    %28 = vst [vmem:[#allocation2] sm:$0xff] %v26
    %29 = vst [vmem:[#allocation2 + $0x8] sm:$0xff] %v27
    // Predicated region
    $region10: #{tpu_custom_call.1} parent=1 // pred_check
      _
    $region11: #{tpu_custom_call.1} parent=1 // pred_check_branch
      %31 = sbr.rel (0) target = $region13
    $region12: #{tpu_custom_call.1} parent=1 // pred_region
      %s33 = ssub.s32 256, 256
      %34 = vsyncadd [#allocation3], %s33
      %s35 = sshll.u32 [#allocation2], 4
      %s36 = int_to_ptr.vmem [resolvable:$true] %s35
      %41 = dma.vmem_to_hbm [thread:$0]  %s36, 256, %s2, [#allocation3], 128, 128, 8
    $region13: #{tpu_custom_call.1} parent=1 // pred_fallthru
      _
    // Predicated region
    $region14: #{tpu_custom_call.1} parent=1 // pred_check
      _
    $region15: #{tpu_custom_call.1} parent=1 // pred_check_branch
      %43 = sbr.rel (0) target = $region17
    $region16: #{tpu_custom_call.1} parent=1 // pred_region
      %44 = dma.done [#allocation3], 256
    $region17: #{tpu_custom_call.1} parent=1 // pred_fallthru
      _
    %45 = vsyncpa [#allocation3], 1

</llo_original>
